<compile_context>
chip_gen: v6e
topology: v6e:2x2x1
jax: 0.10.0
libtpu: 0.0.40
codegen_flags: <defaults>
</compile_context>

<pallas_src>
import functools

import jax
import jax.numpy as jnp
from jax.experimental import pallas as pl
from jax.experimental.pallas import tpu as pltpu

EPS = 1e-6

_TARGET_TILE_BYTES = 4 * 1024 * 1024   # per pipelined DMA buffer (in or out)


def _sublane_multiple(itemsize: int) -> int:
    # f32 -> 8 rows per vreg, bf16 -> 16, int8/fp8 -> 32 (sublane packing).
    return max(8, 32 // itemsize)


def _vmem_limit_bytes() -> int:
    try:
        cap = int(pltpu.get_tpu_info().vmem_capacity_bytes)
    except Exception:
        cap = 128 * 1024 * 1024
    # 3/4 of physical VMEM, capped at 96 MiB: leaves headroom for compiler
    # internal scratch (48 MiB on v7x's 64 MiB parts, 96 MiB on v5e/v6e's 128).
    return max(32 * 1024 * 1024, min((cap * 3) // 4, 96 * 1024 * 1024))


def _choose_tile_rows(rows: int, h: int, itemsize: int) -> int:
    sub = _sublane_multiple(itemsize)
    per_row_bytes = max(1, h * itemsize)

    # ~4 MiB tiles: large enough to sit at the HBM roofline (needs a few MiB),
    # small enough that in(x2) + out(x2) buffers + f32 temps fit VMEM on v7x.
    t = _TARGET_TILE_BYTES // per_row_bytes
    t = max(sub, (t // sub) * sub)

    # v7x megacore: guarantee >= 2 grid steps on the "parallel" axis so both
    # TensorCores get work, unless the tensor is too small to split.
    if rows > 2 * sub:
        half = pl.cdiv(pl.cdiv(rows, 2), sub) * sub
        t = min(t, half)

    # Never exceed the total row count (rounded up to the sublane multiple);
    # a single ragged block is handled by masked edge writeback.
    t = min(t, pl.cdiv(rows, sub) * sub)
    return t


def _layernorm_kernel(alpha_ref, beta_ref, x_ref, o_ref, *, h):
    # x_ref: (tile_rows, H) tile in VMEM; alpha/beta: (1,) scalars in SMEM.
    x = x_ref[...].astype(jnp.float32)

    # Two-pass, numerically-stable per-row statistics (matches the reference
    # compute path closely; no lane mask needed since the block spans full H).
    mean = jnp.sum(x, axis=-1, keepdims=True) * (1.0 / h)
    diff = x - mean
    ssq = jnp.sum(diff * diff, axis=-1, keepdims=True)

    # torch.std defaults to the unbiased estimator (ddof=1); guard h == 1.
    denom = max(h - 1, 1)
    std = jnp.sqrt(ssq * (1.0 / denom))

    # Per-row reciprocal on the EUP; fold alpha and mean into per-row
    # scale/bias so the elementwise tail is a single FMA from x (the `diff`
    # temporary is not carried into the output pass).
    inv = pl.reciprocal(std + EPS, approx=False)              # (tile_rows, 1)
    alpha = alpha_ref[0]
    beta = beta_ref[0]
    scale = alpha * inv                                        # (tile_rows, 1)
    bias = beta - mean * scale                                 # (tile_rows, 1)

    o_ref[...] = (x * scale + bias).astype(o_ref.dtype)


def layer_normalization(x, alpha, beta, *, tile_rows=None):
    """LayerNormalization.forward: normalize over the last axis, scalar affine."""
    orig_shape = x.shape
    h = orig_shape[-1]
    x2 = x.reshape(-1, h)
    rows = x2.shape[0]
    itemsize = jnp.dtype(x.dtype).itemsize
    sub = _sublane_multiple(itemsize)

    if tile_rows is None:
        tile_rows = _choose_tile_rows(rows, h, itemsize)
    assert (tile_rows % sub == 0) or (tile_rows == rows), (
        "tile_rows must be a multiple of the dtype sublane packing or equal "
        "to the full row count")

    grid = (pl.cdiv(rows, tile_rows),)
    kernel = functools.partial(_layernorm_kernel, h=h)

    out = pl.pallas_call(
        kernel,
        out_shape=jax.ShapeDtypeStruct((rows, h), x.dtype),
        grid_spec=pltpu.PrefetchScalarGridSpec(
            num_scalar_prefetch=0,
            grid=grid,
            in_specs=[
                pl.BlockSpec(memory_space=pltpu.SMEM),         # alpha (1,)
                pl.BlockSpec(memory_space=pltpu.SMEM),         # beta  (1,)
                pl.BlockSpec((tile_rows, h), lambda i: (i, 0)),
            ],
            out_specs=pl.BlockSpec((tile_rows, h), lambda i: (i, 0)),
        ),
        compiler_params=pltpu.CompilerParams(
            dimension_semantics=("parallel",),
            vmem_limit_bytes=_vmem_limit_bytes(),
        ),
    )(alpha, beta, x2)

    return out.reshape(orig_shape)


def layer_normalization_ref(x, alpha, beta):
    mean = jnp.mean(x, axis=-1, keepdims=True)
    diff = x - mean
    var = jnp.sum(diff * diff, axis=-1, keepdims=True) / (x.shape[-1] - 1)
    std = jnp.sqrt(var)
    return alpha * diff / (std + EPS) + beta


if __name__ == "__main__":
    key = jax.random.PRNGKey(0)
    B, S, H = 2, 8, 32
    x = jax.random.normal(key, (B, S, H), dtype=jnp.float32)

    # Deterministic params matching nn.Parameter(torch.ones(1) / torch.zeros(1)).
    alpha = jnp.ones((1,), dtype=jnp.float32)
    beta = jnp.zeros((1,), dtype=jnp.float32)

    out = layer_normalization(x, alpha, beta)
    out = jax.block_until_ready(out)

    ref = layer_normalization_ref(x, alpha, beta)
    assert out.shape == x.shape
    assert jnp.allclose(out, ref, atol=1e-5, rtol=1e-5), "mismatch vs reference"
    print("KERNEL_OK")
</pallas_src>

<mosaic_0001>
module attributes {stable_mosaic.version = 11 : i64} {
  func.func @_layernorm_kernel(%arg0: i32, %arg1: memref<1xf32, #tpu.memory_space<smem>>, %arg2: memref<1xf32, #tpu.memory_space<smem>>, %arg3: memref<16x32xf32, #tpu.memory_space<vmem>>, %arg4: memref<16x32xf32, #tpu.memory_space<vmem>>) attributes {dimension_semantics = [#tpu.dimension_semantics<parallel>], iteration_bounds = array<i64: 1>, scalar_prefetch = 0 : i64, scratch_operands = 0 : i64, tpu.core_type = #tpu.core_type<tc>, window_params = [{transform_indices = @transform_0, window_bounds = array<i64: 1>}, {transform_indices = @transform_1, window_bounds = array<i64: 1>}, {transform_indices = @transform_2, window_bounds = array<i64: 16, 32>}, {transform_indices = @transform_3, window_bounds = array<i64: 16, 32>}]} {
    %c0 = arith.constant 0 : index
    %c0_0 = arith.constant 0 : index
    %0 = vector.load %arg3[%c0, %c0_0] : memref<16x32xf32, #tpu.memory_space<vmem>>, vector<16x32xf32>
    %cst = arith.constant dense<0.000000e+00> : vector<16xf32>
    %1 = vector.multi_reduction <add>, %0, %cst [1] : vector<16x32xf32> to vector<16xf32>
    %2 = vector.shape_cast %1 : vector<16xf32> to vector<16x1xf32>
    %cst_1 = arith.constant 3.125000e-02 : f32
    %3 = vector.broadcast %cst_1 : f32 to vector<16x1xf32>
    %4 = arith.mulf %2, %3 : vector<16x1xf32>
    %5 = vector.broadcast %4 : vector<16x1xf32> to vector<16x32xf32>
    %6 = arith.subf %0, %5 : vector<16x32xf32>
    %7 = arith.mulf %6, %6 : vector<16x32xf32>
    %cst_2 = arith.constant dense<0.000000e+00> : vector<16xf32>
    %8 = vector.multi_reduction <add>, %7, %cst_2 [1] : vector<16x32xf32> to vector<16xf32>
    %9 = vector.shape_cast %8 : vector<16xf32> to vector<16x1xf32>
    %cst_3 = arith.constant 0.0322580636 : f32
    %10 = vector.broadcast %cst_3 : f32 to vector<16x1xf32>
    %11 = arith.mulf %9, %10 : vector<16x1xf32>
    %12 = math.sqrt %11 : vector<16x1xf32>
    %cst_4 = arith.constant 9.99999997E-7 : f32
    %13 = vector.broadcast %cst_4 : f32 to vector<16x1xf32>
    %14 = arith.addf %12, %13 : vector<16x1xf32>
    %15 = tpu.reciprocal %14 : vector<16x1xf32> -> vector<16x1xf32>
    %c0_5 = arith.constant 0 : index
    %16 = memref.load %arg1[%c0_5] : memref<1xf32, #tpu.memory_space<smem>>
    %c0_6 = arith.constant 0 : index
    %17 = memref.load %arg2[%c0_6] : memref<1xf32, #tpu.memory_space<smem>>
    %18 = vector.broadcast %16 : f32 to vector<16x1xf32>
    %19 = arith.mulf %18, %15 : vector<16x1xf32>
    %20 = arith.mulf %4, %19 : vector<16x1xf32>
    %21 = vector.broadcast %17 : f32 to vector<16x1xf32>
    %22 = arith.subf %21, %20 : vector<16x1xf32>
    %23 = vector.broadcast %19 : vector<16x1xf32> to vector<16x32xf32>
    %24 = arith.mulf %0, %23 : vector<16x32xf32>
    %25 = vector.broadcast %22 : vector<16x1xf32> to vector<16x32xf32>
    %26 = arith.addf %24, %25 : vector<16x32xf32>
    %c0_7 = arith.constant 0 : index
    %c0_8 = arith.constant 0 : index
    %27 = vector.load %arg4[%c0_7, %c0_8] : memref<16x32xf32, #tpu.memory_space<vmem>>, vector<16x32xf32>
    tpu.vector_store %arg4[%c0_7, %c0_8], %26 {strides = array<i32>} : memref<16x32xf32, #tpu.memory_space<vmem>>, vector<16x32xf32>,
    return
  }
  func.func @transform_0(%arg0: i32) -> i32 {
    %c0_i32 = arith.constant 0 : i32
    %c0_i32_0 = arith.constant 0 : i32
    return %c0_i32 : i32
  }
  func.func @transform_1(%arg0: i32) -> i32 {
    %c0_i32 = arith.constant 0 : i32
    %c0_i32_0 = arith.constant 0 : i32
    return %c0_i32 : i32
  }
  func.func @transform_2(%arg0: i32) -> (i32, i32) {
    %c0_i32 = arith.constant 0 : i32
    %c0_i32_0 = arith.constant 0 : i32
    return %arg0, %c0_i32 : i32, i32
  }
  func.func @transform_3(%arg0: i32) -> (i32, i32) {
    %c0_i32 = arith.constant 0 : i32
    %c0_i32_0 = arith.constant 0 : i32
    return %arg0, %c0_i32 : i32, i32
  }
}

</mosaic_0001>

<llo_original>
// kernel: tpu_custom_call.1
$region0: #{tpu_custom_call.1}
  #allocation0 [shape = 'u32[]', space=smem, size = 0x4, offset = 0x4, fixed_abs, tag = 'smem constant byte address 0x4 - core index']
  #allocation1 [shape = 'u32[144,128]{1,0:T(1,128)}', space=vmem, size = 0x12000, scoped, tag = 'internal scratch']
  #allocation2 [shape = 'f32[1]{0:T(128)S(6)}', space=smem, size = 0x200, scoped, tag = 'scoped memory for tpu_custom_call.1']
  #allocation3 [shape = 'f32[1]{0:T(128)S(6)}', space=smem, size = 0x200, scoped, tag = 'scoped memory for tpu_custom_call.1']
  %s0 = inlined_call_operand.<no memory space> [shape: f32[1], index: 0, kind: input, shape index: {}]
  %s1 = inlined_call_operand.<no memory space> [shape: f32[1], index: 1, kind: input, shape index: {}]
  %s2 = inlined_call_operand.hbm [shape: f32[16,32], index: 2, kind: input, shape index: {}]
  %s3 = inlined_call_operand.hbm [shape: f32[16,32], index: 3, kind: output, shape index: {}]
  %s4 = sld [smem:[#allocation0]]
  $region26: #{tpu_custom_call.1} parent=0
    _
  %s6 = ssub.s32 1, %s4
  %s7 = scalar_select 0, %s6, %s4
  %8 = sst [smem:[#allocation2]] %s0
  %9 = sst [smem:[#allocation3]] %s1
  $region1: #{tpu_custom_call.1} parent=0
    #allocation4 [shape = 'u8[8192]{0}', space=vmem, size = 0x2000, scoped, tag = 'input window, operand 2, single buffered']
    #allocation5 [shape = 's32[1]{0}', space=sflag, size = 0x4, scoped, tag = 'scoped memory for tpu_custom_call.1']
    #allocation6 [shape = 's32[1]{0}', space=sflag, size = 0x4, scoped, tag = 'scoped memory for tpu_custom_call.1']
    #allocation7 [shape = 'u8[8192]{0}', space=vmem, size = 0x2000, scoped, tag = 'output window, operand 0, single buffered']
    %10 = vsyncpa [#allocation5], 0
    %11 = vsyncpa [#allocation6], 0
    // Predicated region
    $region2: #{tpu_custom_call.1} parent=1 // pred_check
      _
    $region3: #{tpu_custom_call.1} parent=1 // pred_check_branch
      %13 = sbr.rel (0) target = $region5
    $region4: #{tpu_custom_call.1} parent=1 // pred_region
      _
    $region5: #{tpu_custom_call.1} parent=1 // pred_fallthru
      _
    // Predicated region
    $region6: #{tpu_custom_call.1} parent=1 // pred_check
      _
    $region7: #{tpu_custom_call.1} parent=1 // pred_check_branch
      %15 = sbr.rel (0) target = $region9
    $region8: #{tpu_custom_call.1} parent=1 // pred_region
      _
    $region9: #{tpu_custom_call.1} parent=1 // pred_fallthru
      _
    // Predicated region
    $region10: #{tpu_custom_call.1} parent=1 // pred_check
      _
    $region11: #{tpu_custom_call.1} parent=1 // pred_check_branch
      %17 = sbr.rel (0) target = $region13
    $region12: #{tpu_custom_call.1} parent=1 // pred_region
      %s19 = ssub.s32 256, 256
      %20 = vsyncadd [#allocation5], %s19
      %s21 = sshll.u32 [#allocation4], 4
      %s22 = int_to_ptr.vmem [resolvable:$true] %s21
      %27 = dma.hbm_to_vmem [thread:$0]  %s2, 256, %s22, [#allocation5], 128, 128, 8
    $region13: #{tpu_custom_call.1} parent=1 // pred_fallthru
      _
    // Predicated region
    $region14: #{tpu_custom_call.1} parent=1 // pred_check
      _
    $region15: #{tpu_custom_call.1} parent=1 // pred_check_branch
      %29 = sbr.rel (0) target = $region17
    $region16: #{tpu_custom_call.1} parent=1 // pred_region
      %30 = dma.done [#allocation5], 256
    $region17: #{tpu_custom_call.1} parent=1 // pred_fallthru
      _
    %v31 = vld [vmem:[#allocation4] sm:$0xff]
    %v32 = vld [vmem:[#allocation4 + $0x8] sm:$0xff]
    %vm33 = vcmask 261120
    %v34 = vsel %vm33, %v31, 0.0
    %35 = vadd.xlane.f32.xlu0 %v34
    %v36 = vpop.xlane.xlu0 %35
    %v37 = vsel %vm33, %v32, 0.0
    %38 = vadd.xlane.f32.xlu0 %v37
    %v39 = vpop.xlane.xlu0 %38
    %v40 = vmul.f32 %v36, 0.03125
    %v41 = vmul.f32 %v39, 0.03125
    %v42 = vsub.f32 %v31, %v40
    %v43 = vsub.f32 %v32, %v41
    %v44 = vmul.f32 %v42, %v42
    %v45 = vmul.f32 %v43, %v43
    %v46 = vsel %vm33, %v44, 0.0
    %47 = vadd.xlane.f32.xlu0 %v46
    %v48 = vpop.xlane.xlu0 %47
    %v49 = vsel %vm33, %v45, 0.0
    %50 = vadd.xlane.f32.xlu0 %v49
    %v51 = vpop.xlane.xlu0 %50
    %v52 = vmul.f32 %v48, 0.032258064
    %v53 = vmul.f32 %v51, 0.032258064
    %v54 = vrsqrt.pop %v52
    %v55 = vmul.f32 %v52, %v54
    %vm56 = vcmp.eq.f32.partialorder %v52, inf
    %v57 = vsel %vm56, %v52, %v55
    %vm58 = vcmp.eq.f32.partialorder %v52, 0.0
    %v59 = vand.u32 %v52, 2147483648
    %v60 = vsel %vm58, %v59, %v57
    %v61 = vrsqrt.pop %v53
    %v62 = vmul.f32 %v53, %v61
    %vm63 = vcmp.eq.f32.partialorder %v53, inf
    %v64 = vsel %vm63, %v53, %v62
    %vm65 = vcmp.eq.f32.partialorder %v53, 0.0
    %v66 = vand.u32 %v53, 2147483648
    %v67 = vsel %vm65, %v66, %v64
    %v68 = vadd.f32 %v60, 1e-06
    %v69 = vadd.f32 %v67, 1e-06
    %v70 = vrcp.pop %v68
    %v71 = vrcp.pop %v69
    %s72 = sld [smem:[#allocation2]]
    %s73 = sld [smem:[#allocation3]]
    %v74 = vstv %s72
    %v75 = vmul.f32 %v74, %v70
    %v76 = vmul.f32 %v74, %v71
    %v77 = vmul.f32 %v40, %v75
    %v78 = vmul.f32 %v41, %v76
    %v79 = vstv %s73
    %v80 = vsub.f32 %v79, %v77
    %v81 = vsub.f32 %v79, %v78
    %v82 = vmul.f32 %v31, %v75
    %v83 = vmul.f32 %v32, %v76
    %v84 = vadd.f32 %v82, %v80
    %v85 = vadd.f32 %v83, %v81
    %86 = vst.msk [vmem:[#allocation7] sm:$0xff] %vm33, %v84
    %87 = vst.msk [vmem:[#allocation7 + $0x8] sm:$0xff] %vm33, %v85
    // Predicated region
    $region18: #{tpu_custom_call.1} parent=1 // pred_check
      _
    $region19: #{tpu_custom_call.1} parent=1 // pred_check_branch
      %89 = sbr.rel (0) target = $region21
    $region20: #{tpu_custom_call.1} parent=1 // pred_region
      %s91 = ssub.s32 256, 256
      %92 = vsyncadd [#allocation6], %s91
      %s93 = sshll.u32 [#allocation7], 4
      %s94 = int_to_ptr.vmem [resolvable:$true] %s93
      %99 = dma.vmem_to_hbm [thread:$0]  %s94, 256, %s3, [#allocation6], 128, 128, 8
    $region21: #{tpu_custom_call.1} parent=1 // pred_fallthru
      _
    // Predicated region
    $region22: #{tpu_custom_call.1} parent=1 // pred_check
      _
    $region23: #{tpu_custom_call.1} parent=1 // pred_check_branch
      %101 = sbr.rel (0) target = $region25
    $region24: #{tpu_custom_call.1} parent=1 // pred_region
      %102 = dma.done [#allocation6], 256
    $region25: #{tpu_custom_call.1} parent=1 // pred_fallthru
      _
    %103 = vsyncpa [#allocation5], 1
    %104 = vsyncpa [#allocation6], 1

</llo_original>
